<compile_context>
chip_gen: v7x
topology: tpu7x:2x2x1
jax: 0.10.0
libtpu: 0.0.40
codegen_flags: <defaults>
</compile_context>

<pallas_src>
import jax
import jax.numpy as jnp
from jax.experimental import pallas as pl
from jax.experimental.pallas import tpu as pltpu


# ---------------------------------------------------------------------------
# Pallas backward kernel: per-row scaled copy
# ---------------------------------------------------------------------------
def _scale_kernel(s_ref, g_ref, o_ref):
    # s_ref: (TB, 1) float32 per-row scaling factors
    # g_ref: (TB, TN) grads, o_ref: (TB, TN) scaled grads (same dtype as g)
    g = g_ref[...]
    s = s_ref[...].astype(g_ref.dtype)          # cast the tiny scale, not the tile
    o_ref[...] = (g * s).astype(o_ref.dtype)    # single VPU vmul per vreg


def _largest_divisor_multiple(dim, unit, max_val):
    """Largest d <= max_val with d % unit == 0 and dim % d == 0.

    If `dim` is not a multiple of `unit`, return the full dim (a block dim
    equal to the full array extent is always legal)."""
    if dim % unit != 0:
        return dim
    d = (max_val // unit) * unit
    while d >= unit:
        if dim % d == 0:
            return d
        d -= unit
    return unit


def _scale_pallas(g, scaling_factors):
    """g * scaling_factors[:, broadcast...] via a lane-dense Pallas kernel."""
    orig_shape = g.shape
    B = orig_shape[0]
    g2 = g.reshape(B, -1)                              # lane-dense (B, N) view
    N = g2.shape[1]
    sf2 = scaling_factors.reshape(B, 1).astype(jnp.float32)

    itemsize = g2.dtype.itemsize
    TB = _largest_divisor_multiple(B, 8, 64)
    TN = _largest_divisor_multiple(N, 128, 8192)
    # Keep a single block comfortably small (double-buffered in + out must fit
    # the scoped VMEM limit; blocks stay <= ~4 MiB here).
    while TB * TN * itemsize > 4 * 1024 * 1024 and TN % 256 == 0:
        TN //= 2

    grid = (B // TB, N // TN)
    out = pl.pallas_call(
        _scale_kernel,
        out_shape=jax.ShapeDtypeStruct((B, N), g2.dtype),
        grid=grid,
        in_specs=[
            pl.BlockSpec((TB, 1), lambda i, j: (i, 0)),    # per-row scales
            pl.BlockSpec((TB, TN), lambda i, j: (i, j)),   # grads
        ],
        out_specs=pl.BlockSpec((TB, TN), lambda i, j: (i, j)),
        compiler_params=pltpu.CompilerParams(
            dimension_semantics=("parallel", "parallel"),
            vmem_limit_bytes=32 * 1024 * 1024,
        ),
    )(sf2, g2)
    return out.reshape(orig_shape)


# ---------------------------------------------------------------------------
# grad_scaling Function (identity fwd, scaled bwd) via custom_vjp
# ---------------------------------------------------------------------------
@jax.custom_vjp
def grad_scaling(x, scaling_factors):
    # Forward of the PyTorch Function is the identity on x -> no kernel,
    # no HBM round-trip.
    del scaling_factors
    return x


def _gs_fwd(x, scaling_factors):
    return x, scaling_factors


def _gs_bwd(scaling_factors, g):
    # PyTorch returns (grad_x * scaling_factors, None); JAX needs a zero
    # cotangent for the second primal.
    return _scale_pallas(g, scaling_factors), jnp.zeros_like(scaling_factors)


grad_scaling.defvjp(_gs_fwd, _gs_bwd)


# ---------------------------------------------------------------------------
# Module equivalent
# ---------------------------------------------------------------------------
class GradScaling:
    def __init__(self, nums):
        amount = float(sum(nums))
        self.target_ratios = [float(n) / amount for n in nums]

    def _scaling_factors(self, indices, batch_size):
        # Tiny scatter of per-class scalars into a length-B vector (matches the
        # Python loop in the PyTorch forward).
        sf = jnp.zeros((batch_size,), dtype=jnp.float32)
        for cls_indices, target_ratio in zip(indices, self.target_ratios):
            cur_ratio = float(len(cls_indices)) / float(batch_size)
            scaling_factor = target_ratio / cur_ratio
            sf = sf.at[jnp.asarray(cls_indices, dtype=jnp.int32)].set(
                jnp.float32(scaling_factor))
        return sf

    def __call__(self, x, indices, batch_size):
        if x.ndim not in (2, 4):
            raise NotImplementedError
        scaling_factors = self._scaling_factors(indices, batch_size)
        return grad_scaling(x, scaling_factors)


# ---------------------------------------------------------------------------
# Demo / smoke test
# ---------------------------------------------------------------------------
if __name__ == "__main__":
    key = jax.random.PRNGKey(0)
    B, C, H, W = 4, 4, 16, 16
    x = jax.random.normal(key, (B, C, H, W), dtype=jnp.float32)

    # Two classes with equal TARGET ratios, but unbalanced in the batch:
    # samples {0,1,2} -> class 0, sample {3} -> class 1.
    #   class 0 factor = 0.5 / 0.75 = 2/3,  class 1 factor = 0.5 / 0.25 = 2.0
    nums = [1, 1]
    indices = [[0, 1, 2], [3]]

    mod = GradScaling(nums)
    sf = mod._scaling_factors(indices, B)

    # Forward: identity on x (no kernel).
    y = mod(x, indices, B)
    jax.block_until_ready(y)
    assert y.shape == x.shape and y.dtype == x.dtype
    assert bool(jnp.allclose(y, x)), "forward must be identity"

    # Run the backward Pallas kernel directly once.
    g = jnp.ones_like(x)
    scaled = _scale_pallas(g, sf)
    jax.block_until_ready(scaled)
    expected = jnp.ones_like(x) * sf.reshape(-1, 1, 1, 1)
    assert bool(jnp.allclose(scaled, expected, atol=1e-6))

    # Backward via autodiff: grads scaled per-sample by target_ratio / cur_ratio.
    gx = jax.grad(lambda xx: jnp.sum(mod(xx, indices, B)))(x)
    jax.block_until_ready(gx)
    assert bool(jnp.allclose(gx, expected, atol=1e-6))

    # 2-D path (feature dim not a multiple of 128 -> full-extent lane block).
    x2 = jax.random.normal(jax.random.PRNGKey(1), (B, 32), dtype=jnp.float32)
    y2 = mod(x2, indices, B)
    jax.block_until_ready(y2)
    assert bool(jnp.allclose(y2, x2))
    gx2 = jax.grad(lambda xx: jnp.sum(mod(xx, indices, B)))(x2)
    jax.block_until_ready(gx2)
    assert bool(jnp.allclose(gx2, jnp.ones_like(x2) * sf.reshape(-1, 1), atol=1e-6))

    # bf16 grads exercise the in-kernel scale cast (result stays bf16).
    x3 = jax.random.normal(jax.random.PRNGKey(2), (B, 256), dtype=jnp.bfloat16)
    gx3 = jax.grad(lambda xx: jnp.sum(mod(xx, indices, B).astype(jnp.float32)))(x3)
    jax.block_until_ready(gx3)
    assert gx3.dtype == jnp.bfloat16
    assert bool(jnp.allclose(gx3.astype(jnp.float32),
                             jnp.ones((B, 256), jnp.float32) * sf.reshape(-1, 1),
                             atol=1e-2))

    print("KERNEL_OK")
</pallas_src>

<mosaic_0001>
module attributes {stable_mosaic.version = 11 : i64} {
  func.func @_scale_kernel(%arg0: i32, %arg1: i32, %arg2: memref<4x1xf32, #tpu.memory_space<vmem>>, %arg3: memref<4x1024xf32, #tpu.memory_space<vmem>>, %arg4: memref<4x1024xf32, #tpu.memory_space<vmem>>) attributes {dimension_semantics = [#tpu.dimension_semantics<parallel>, #tpu.dimension_semantics<parallel>], iteration_bounds = array<i64: 1, 1>, scalar_prefetch = 0 : i64, scratch_operands = 0 : i64, tpu.core_type = #tpu.core_type<tc>, window_params = [{transform_indices = @transform_0, window_bounds = array<i64: 4, 1>}, {transform_indices = @transform_1, window_bounds = array<i64: 4, 1024>}, {transform_indices = @transform_2, window_bounds = array<i64: 4, 1024>}]} {
    %c0 = arith.constant 0 : index
    %c0_0 = arith.constant 0 : index
    %0 = vector.load %arg3[%c0, %c0_0] : memref<4x1024xf32, #tpu.memory_space<vmem>>, vector<4x1024xf32>
    %c0_1 = arith.constant 0 : index
    %c0_2 = arith.constant 0 : index
    %1 = vector.load %arg2[%c0_1, %c0_2] : memref<4x1xf32, #tpu.memory_space<vmem>>, vector<4x1xf32>
    %2 = vector.broadcast %1 : vector<4x1xf32> to vector<4x1024xf32>
    %3 = arith.mulf %0, %2 : vector<4x1024xf32>
    %c0_3 = arith.constant 0 : index
    %c0_4 = arith.constant 0 : index
    %4 = vector.load %arg4[%c0_3, %c0_4] : memref<4x1024xf32, #tpu.memory_space<vmem>>, vector<4x1024xf32>
    tpu.vector_store %arg4[%c0_3, %c0_4], %3 {strides = array<i32>} : memref<4x1024xf32, #tpu.memory_space<vmem>>, vector<4x1024xf32>,
    return
  }
  func.func @transform_0(%arg0: i32, %arg1: i32) -> (i32, i32) {
    %c0_i32 = arith.constant 0 : i32
    %c0_i32_0 = arith.constant 0 : i32
    return %arg0, %c0_i32 : i32, i32
  }
  func.func @transform_1(%arg0: i32, %arg1: i32) -> (i32, i32) {
    %c0_i32 = arith.constant 0 : i32
    return %arg0, %arg1 : i32, i32
  }
  func.func @transform_2(%arg0: i32, %arg1: i32) -> (i32, i32) {
    %c0_i32 = arith.constant 0 : i32
    return %arg0, %arg1 : i32, i32
  }
}

</mosaic_0001>

<llo_original>
// kernel: tpu_custom_call.1
$region0: #{tpu_custom_call.1}
  #allocation0 [shape = 'u32[]', space=smem, size = 0x4, offset = 0x4, fixed_abs, tag = 'smem constant byte address 0x4 - core index']
  #allocation1 [shape = 'u32[144,128]{1,0:T(1,128)}', space=vmem, size = 0x12000, scoped, tag = 'internal scratch']
  %s0 = inlined_call_operand.vmem [shape: f32[4,1], index: 0, kind: input, shape index: {}]
  %s1 = inlined_call_operand.hbm [shape: f32[4,1024], index: 1, kind: input, shape index: {}]
  %s2 = inlined_call_operand.hbm [shape: f32[4,1024], index: 2, kind: output, shape index: {}]
  %s3 = sld [smem:[#allocation0]]
  $region22: #{tpu_custom_call.1} parent=0
    _
  %s5 = ssub.s32 1, %s3
  %s6 = scalar_select 0, %s5, %s3
  $region1: #{tpu_custom_call.1} parent=0
    #allocation2 [shape = 'u8[16384]{0}', space=vmem, size = 0x4000, scoped, tag = 'input window, operand 1, single buffered']
    #allocation3 [shape = 's32[1]{0}', space=sflag, size = 0x4, scoped, tag = 'scoped memory for tpu_custom_call.1']
    #allocation4 [shape = 's32[1]{0}', space=sflag, size = 0x4, scoped, tag = 'scoped memory for tpu_custom_call.1']
    #allocation5 [shape = 'u8[16384]{0}', space=vmem, size = 0x4000, scoped, tag = 'output window, operand 0, single buffered']
    %7 = vsyncpa [#allocation3], 0
    %8 = vsyncpa [#allocation4], 0
    // Predicated region
    $region2: #{tpu_custom_call.1} parent=1 // pred_check
      _
    $region3: #{tpu_custom_call.1} parent=1 // pred_check_branch
      %10 = sbr.rel (0) target = $region5
    $region4: #{tpu_custom_call.1} parent=1 // pred_region
      _
    $region5: #{tpu_custom_call.1} parent=1 // pred_fallthru
      _
    // Predicated region
    $region6: #{tpu_custom_call.1} parent=1 // pred_check
      _
    $region7: #{tpu_custom_call.1} parent=1 // pred_check_branch
      %12 = sbr.rel (0) target = $region9
    $region8: #{tpu_custom_call.1} parent=1 // pred_region
      %s14 = ssub.s32 512, 512
      %15 = vsyncadd [#allocation3], %s14
      %s17 = sshll.u32 [#allocation2], 4
      %s18 = int_to_ptr.vmem [resolvable:$true] %s17
      %20 = dma.hbm_to_vmem [thread:$0]  %s1, 512, %s18, [#allocation3]
    $region9: #{tpu_custom_call.1} parent=1 // pred_fallthru
      _
    // Predicated region
    $region10: #{tpu_custom_call.1} parent=1 // pred_check
      _
    $region11: #{tpu_custom_call.1} parent=1 // pred_check_branch
      %22 = sbr.rel (0) target = $region13
    $region12: #{tpu_custom_call.1} parent=1 // pred_region
      %23 = dma.done [#allocation3], 512
    $region13: #{tpu_custom_call.1} parent=1 // pred_fallthru
      _
    %v24 = vld [vmem:[#allocation2] sm:$0xff]
    %v25 = vld [vmem:[#allocation2 + $0x8] sm:$0xff]
    %v26 = vld [vmem:[#allocation2 + $0x10] sm:$0xff]
    %v27 = vld [vmem:[#allocation2 + $0x18] sm:$0xff]
    %v28 = vld [vmem:[%s0] sm:$0xf]
    %30 = vset.pattern.permute.xlu0 0
    %31 = vperm.xlu0 %30, %v28
    %v32 = vpop.permute.xlu0 %31
    %v34 = vunpack.c.l.s4 839922192
    %v35 = vunpack.c.0.s8 %v34
    %v36 = vlaneseq
    %v37 = vshrl.u32 %v36, 7
    %v38 = vsub.s32 %v35, %v37
    %v39 = vrot.slane %v32, %v38
    %v41 = vmul.f32 %v24, %v39
    %v42 = vmul.f32 %v25, %v39
    %v43 = vmul.f32 %v26, %v39
    %v44 = vmul.f32 %v27, %v39
    %45 = vst [vmem:[#allocation5] sm:$0xff] %v41
    %46 = vst [vmem:[#allocation5 + $0x8] sm:$0xff] %v42
    %47 = vst [vmem:[#allocation5 + $0x10] sm:$0xff] %v43
    %48 = vst [vmem:[#allocation5 + $0x18] sm:$0xff] %v44
    // Predicated region
    $region14: #{tpu_custom_call.1} parent=1 // pred_check
      _
    $region15: #{tpu_custom_call.1} parent=1 // pred_check_branch
      %50 = sbr.rel (0) target = $region17
    $region16: #{tpu_custom_call.1} parent=1 // pred_region
      %s52 = ssub.s32 512, 512
      %53 = vsyncadd [#allocation4], %s52
      %s55 = sshll.u32 [#allocation5], 4
      %s56 = int_to_ptr.vmem [resolvable:$true] %s55
      %58 = dma.vmem_to_hbm [thread:$0]  %s56, 512, %s2, [#allocation4]
    $region17: #{tpu_custom_call.1} parent=1 // pred_fallthru
      _
    // Predicated region
    $region18: #{tpu_custom_call.1} parent=1 // pred_check
      _
    $region19: #{tpu_custom_call.1} parent=1 // pred_check_branch
      %60 = sbr.rel (0) target = $region21
    $region20: #{tpu_custom_call.1} parent=1 // pred_region
      %61 = dma.done [#allocation4], 512
    $region21: #{tpu_custom_call.1} parent=1 // pred_fallthru
      _
    %62 = vsyncpa [#allocation3], 1
    %63 = vsyncpa [#allocation4], 1

</llo_original>
